<compile_context>
chip_gen: v7x
topology: tpu7x:2x2x1
jax: 0.10.0
libtpu: 0.0.40
codegen_flags: <defaults>
</compile_context>

<pallas_src>
import functools

import jax
import jax.numpy as jnp
from jax.experimental import pallas as pl
from jax.experimental.pallas import tpu as pltpu


def _round_up(x, m):
    return ((x + m - 1) // m) * m


def _mlp_kernel(x_ref, w1_ref, w2_ref, w3_ref, b_ref, o_ref, *, h1, h2, out_dim):
    # Packed f32 biases: row 0 -> b1[:h1], row 1 -> b2[:h2], row 2 -> b3[:out_dim].
    # Kept f32 so the elementwise path stays f32 on all generations.
    b1 = b_ref[0:1, 0:h1]
    b2 = b_ref[1:2, 0:h2]
    b3 = b_ref[2:3, 0:out_dim]

    # x arrives f32 from HBM; cast to the MXU compute dtype (= w1's dtype)
    # per-tile in-kernel.  The VPU pack is hidden under the DMA and avoids a
    # separate wrapper-side convert pass over x.
    x = x_ref[...].astype(w1_ref.dtype)

    # Layer 1: Linear + ReLU   (Dropout(0.25) is identity in eval mode)
    a1 = jnp.dot(x, w1_ref[...], preferred_element_type=jnp.float32)
    a1 = jnp.maximum(a1 + b1, 0.0).astype(w2_ref.dtype)

    # Layer 2: Linear + ReLU   (Dropout(0.15) is identity in eval mode)
    a2 = jnp.dot(a1, w2_ref[...], preferred_element_type=jnp.float32)
    a2 = jnp.maximum(a2 + b2, 0.0).astype(w3_ref.dtype)

    # Output layer: Linear (no activation)
    out = jnp.dot(a2, w3_ref[...], preferred_element_type=jnp.float32) + b3
    o_ref[...] = out.astype(o_ref.dtype)


def tabular_mlp_forward(x, params, *, batch_tile=4096, use_bf16=True,
                        out_dtype=jnp.float32):
    """Fused MLP forward pass with a single pallas_call.

    x: [B, input_dim] float32
    params: dict with w1 [in,128], b1 [1,128], w2 [128,64], b2 [1,64],
            w3 [64,out], b3 [1,out]   (weights are [in_features, out_features])
    batch_tile: desired rows per grid step (amortizes the ~0.35us/step cost).
    use_bf16: feed the MXU bf16 (f32 accumulation).  False -> exact f32 path.
    out_dtype: dtype of the returned activations.
    """
    w1, b1, w2, b2, w3, b3 = (params["w1"], params["b1"], params["w2"],
                              params["b2"], params["w3"], params["b3"])
    B, in_dim = x.shape
    h1 = w1.shape[1]
    h2 = w2.shape[1]
    out_dim = w3.shape[1]

    compute_dtype = jnp.bfloat16 if use_bf16 else jnp.float32
    # Only the tiny, loop-resident weights are cast in the wrapper; x is cast
    # per-tile inside the kernel.
    w1_c = w1.astype(compute_dtype)
    w2_c = w2.astype(compute_dtype)
    w3_c = w3.astype(compute_dtype)

    # Sublane granularity of the batch tile: x stays f32 (8 is fine) but the
    # output block must respect its dtype's native tile (16 for 16-bit types).
    sub = 16 if jnp.dtype(out_dtype).itemsize == 2 else 8

    # Tile selection:
    #  * large (default 4096 rows) to amortize per-step pipeline overhead,
    #  * capped so the double-buffered f32 x tile fits a ~16 MiB VMEM budget
    #    (keeps wide-in_dim configs portable to v7x's 64 MiB VMEM),
    #  * capped so large batches produce >= 2 grid steps, letting
    #    dimension_semantics=("parallel",) shard over v7x's 2 TensorCores,
    #  * never larger than the sublane-rounded batch.
    x_vmem_budget = 16 * 1024 * 1024
    budget_rows = max(sub, (x_vmem_budget // (2 * in_dim * 4)) // sub * sub)
    tile = min(_round_up(batch_tile, sub), budget_rows, _round_up(B, sub))
    if B >= 1024:
        tile = min(tile, _round_up(-(-B // 2), sub))
    tile = max(tile, sub)

    grid = (pl.cdiv(B, tile),)

    # Pack the three biases into one small resident f32 buffer (lane-aligned
    # rows so in-kernel slices start at offset 0).
    pad_w = _round_up(max(h1, h2, out_dim), 128)
    b_packed = jnp.zeros((3, pad_w), jnp.float32)
    b_packed = b_packed.at[0, :h1].set(b1.reshape(-1).astype(jnp.float32))
    b_packed = b_packed.at[1, :h2].set(b2.reshape(-1).astype(jnp.float32))
    b_packed = b_packed.at[2, :out_dim].set(b3.reshape(-1).astype(jnp.float32))

    w_itemsize = jnp.dtype(compute_dtype).itemsize
    out_itemsize = jnp.dtype(out_dtype).itemsize
    flops = 2 * B * (in_dim * h1 + h1 * h2 + h2 * out_dim)
    bytes_accessed = (B * in_dim * 4                                   # x read (f32)
                      + B * out_dim * out_itemsize                     # out write
                      + (in_dim * h1 + h1 * h2 + h2 * out_dim) * w_itemsize
                      + 3 * pad_w * 4)                                 # packed biases

    kernel = functools.partial(_mlp_kernel, h1=h1, h2=h2, out_dim=out_dim)

    return pl.pallas_call(
        kernel,
        out_shape=jax.ShapeDtypeStruct((B, out_dim), out_dtype),
        grid_spec=pltpu.PrefetchScalarGridSpec(
            num_scalar_prefetch=0,
            grid=grid,
            in_specs=[
                # x: tiled along the batch (partial edge block handled by Pallas)
                pl.BlockSpec((tile, in_dim), lambda i: (i, 0)),
                # weights / packed biases: full arrays, resident across the loop
                pl.BlockSpec((in_dim, h1), lambda i: (0, 0)),
                pl.BlockSpec((h1, h2), lambda i: (0, 0)),
                pl.BlockSpec((h2, out_dim), lambda i: (0, 0)),
                pl.BlockSpec((3, pad_w), lambda i: (0, 0)),
            ],
            out_specs=pl.BlockSpec((tile, out_dim), lambda i: (i, 0)),
        ),
        compiler_params=pltpu.CompilerParams(
            dimension_semantics=("parallel",)),
        cost_estimate=pl.CostEstimate(
            flops=flops, transcendentals=0, bytes_accessed=bytes_accessed),
    )(x, w1_c, w2_c, w3_c, b_packed)


def init_params(key, input_dim, output_dim, hidden=(128, 64)):
    """Deterministic init mirroring the layer shapes of PyTorchTabularModel."""
    dims = (input_dim,) + tuple(hidden) + (output_dim,)
    params = {}
    keys = jax.random.split(key, len(dims) - 1)
    for i, (d_in, d_out) in enumerate(zip(dims[:-1], dims[1:]), start=1):
        kw, kb = jax.random.split(keys[i - 1])
        bound = 1.0 / jnp.sqrt(d_in)
        params[f"w{i}"] = jax.random.uniform(
            kw, (d_in, d_out), jnp.float32, -bound, bound)
        params[f"b{i}"] = jax.random.uniform(
            kb, (1, d_out), jnp.float32, -bound, bound)
    return params


def reference_forward(x, p, compute_dtype=jnp.float32):
    """Pure-JAX reference.  compute_dtype=bf16 mimics the kernel's bf16-MXU
    path (bf16 matmul inputs, f32 accumulation, f32 bias/ReLU)."""
    cd = compute_dtype
    a1 = jnp.dot(x.astype(cd), p["w1"].astype(cd),
                 preferred_element_type=jnp.float32) + p["b1"]
    a1 = jnp.maximum(a1, 0.0)
    a2 = jnp.dot(a1.astype(cd), p["w2"].astype(cd),
                 preferred_element_type=jnp.float32) + p["b2"]
    a2 = jnp.maximum(a2, 0.0)
    return jnp.dot(a2.astype(cd), p["w3"].astype(cd),
                   preferred_element_type=jnp.float32) + p["b3"]


if __name__ == "__main__":
    key = jax.random.PRNGKey(0)
    k_x, k_p, k_x2 = jax.random.split(key, 3)

    batch, input_dim, output_dim = 8, 32, 8
    x = jax.random.normal(k_x, (batch, input_dim), jnp.float32)
    params = init_params(k_p, input_dim, output_dim)

    # Exact f32 MXU path (tight tolerance).
    out = jax.block_until_ready(tabular_mlp_forward(x, params, use_bf16=False))
    ref = reference_forward(x, params)
    assert out.shape == (batch, output_dim)
    assert jnp.allclose(out, ref, atol=1e-4, rtol=1e-4)

    # Default bf16-MXU path + ragged batch (B=10, no wrapper-side pad pass).
    x2 = jax.random.normal(k_x2, (10, input_dim), jnp.float32)
    out2 = jax.block_until_ready(tabular_mlp_forward(x2, params))
    assert out2.shape == (10, output_dim)
    # Tight check against a reference that mimics bf16 MXU inputs exactly.
    ref2_bf16 = reference_forward(x2, params, compute_dtype=jnp.bfloat16)
    assert jnp.allclose(out2, ref2_bf16, atol=1e-3, rtol=1e-3)
    # Loose sanity check against the pure-f32 reference.
    ref2_f32 = reference_forward(x2, params)
    assert jnp.allclose(out2, ref2_f32, atol=1e-1, rtol=1e-1)

    print("KERNEL_OK")
</pallas_src>

<mosaic_0001>
module attributes {stable_mosaic.version = 11 : i64} {
  func.func @_mlp_kernel(%arg0: i32, %arg1: memref<8x32xf32, #tpu.memory_space<vmem>>, %arg2: memref<32x128xf32, #tpu.memory_space<vmem>>, %arg3: memref<128x64xf32, #tpu.memory_space<vmem>>, %arg4: memref<64x8xf32, #tpu.memory_space<vmem>>, %arg5: memref<3x128xf32, #tpu.memory_space<vmem>>, %arg6: memref<8x8xf32, #tpu.memory_space<vmem>>) attributes {dimension_semantics = [#tpu.dimension_semantics<parallel>], iteration_bounds = array<i64: 1>, scalar_prefetch = 0 : i64, scratch_operands = 0 : i64, tpu.core_type = #tpu.core_type<tc>, window_params = [{transform_indices = @transform_0, window_bounds = array<i64: 8, 32>}, {pipeline_mode = #tpu.pipeline_mode<synchronous>, transform_indices = @transform_1, window_bounds = array<i64: 32, 128>}, {pipeline_mode = #tpu.pipeline_mode<synchronous>, transform_indices = @transform_2, window_bounds = array<i64: 128, 64>}, {pipeline_mode = #tpu.pipeline_mode<synchronous>, transform_indices = @transform_3, window_bounds = array<i64: 64, 8>}, {pipeline_mode = #tpu.pipeline_mode<synchronous>, transform_indices = @transform_4, window_bounds = array<i64: 3, 128>}, {transform_indices = @transform_5, window_bounds = array<i64: 8, 8>}]} {
    %c0 = arith.constant 0 : index
    %c0_0 = arith.constant 0 : index
    %0 = vector.load %arg5[%c0, %c0_0] : memref<3x128xf32, #tpu.memory_space<vmem>>, vector<1x128xf32>
    %c1 = arith.constant 1 : index
    %c0_1 = arith.constant 0 : index
    %1 = vector.load %arg5[%c1, %c0_1] : memref<3x128xf32, #tpu.memory_space<vmem>>, vector<1x64xf32>
    %c2 = arith.constant 2 : index
    %c0_2 = arith.constant 0 : index
    %2 = vector.load %arg5[%c2, %c0_2] : memref<3x128xf32, #tpu.memory_space<vmem>>, vector<1x8xf32>
    %c0_3 = arith.constant 0 : index
    %c0_4 = arith.constant 0 : index
    %3 = vector.load %arg1[%c0_3, %c0_4] : memref<8x32xf32, #tpu.memory_space<vmem>>, vector<8x32xf32>
    %c0_5 = arith.constant 0 : index
    %c0_6 = arith.constant 0 : index
    %4 = vector.load %arg2[%c0_5, %c0_6] : memref<32x128xf32, #tpu.memory_space<vmem>>, vector<32x128xf32>
    %cst = arith.constant dense<0.000000e+00> : vector<8x128xf32>
    %5 = tpu.matmul %3, %4, %cst {dimension_numbers = #tpu.dot_dimension_numbers<[1], [0], [0], [1], [0, 0, 1, 1], [], []>} : vector<8x32xf32>, vector<32x128xf32>, vector<8x128xf32> -> vector<8x128xf32>
    %6 = vector.broadcast %0 : vector<1x128xf32> to vector<8x128xf32>
    %7 = arith.addf %5, %6 : vector<8x128xf32>
    %cst_7 = arith.constant 0.000000e+00 : f32
    %8 = vector.broadcast %cst_7 : f32 to vector<8x128xf32>
    %9 = arith.maximumf %7, %8 : vector<8x128xf32>
    %c0_8 = arith.constant 0 : index
    %c0_9 = arith.constant 0 : index
    %10 = vector.load %arg3[%c0_8, %c0_9] : memref<128x64xf32, #tpu.memory_space<vmem>>, vector<128x64xf32>
    %cst_10 = arith.constant dense<0.000000e+00> : vector<8x64xf32>
    %11 = tpu.matmul %9, %10, %cst_10 {dimension_numbers = #tpu.dot_dimension_numbers<[1], [0], [0], [1], [0, 0, 1, 1], [], []>} : vector<8x128xf32>, vector<128x64xf32>, vector<8x64xf32> -> vector<8x64xf32>
    %12 = vector.broadcast %1 : vector<1x64xf32> to vector<8x64xf32>
    %13 = arith.addf %11, %12 : vector<8x64xf32>
    %cst_11 = arith.constant 0.000000e+00 : f32
    %14 = vector.broadcast %cst_11 : f32 to vector<8x64xf32>
    %15 = arith.maximumf %13, %14 : vector<8x64xf32>
    %c0_12 = arith.constant 0 : index
    %c0_13 = arith.constant 0 : index
    %16 = vector.load %arg4[%c0_12, %c0_13] : memref<64x8xf32, #tpu.memory_space<vmem>>, vector<64x8xf32>
    %cst_14 = arith.constant dense<0.000000e+00> : vector<8x8xf32>
    %17 = tpu.matmul %15, %16, %cst_14 {dimension_numbers = #tpu.dot_dimension_numbers<[1], [0], [0], [1], [0, 0, 1, 1], [], []>} : vector<8x64xf32>, vector<64x8xf32>, vector<8x8xf32> -> vector<8x8xf32>
    %18 = vector.broadcast %2 : vector<1x8xf32> to vector<8x8xf32>
    %19 = arith.addf %17, %18 : vector<8x8xf32>
    %c0_15 = arith.constant 0 : index
    %c0_16 = arith.constant 0 : index
    %20 = vector.load %arg6[%c0_15, %c0_16] : memref<8x8xf32, #tpu.memory_space<vmem>>, vector<8x8xf32>
    tpu.vector_store %arg6[%c0_15, %c0_16], %19 {strides = array<i32>} : memref<8x8xf32, #tpu.memory_space<vmem>>, vector<8x8xf32>,
    return
  }
  func.func @transform_0(%arg0: i32) -> (i32, i32) {
    %c0_i32 = arith.constant 0 : i32
    %c0_i32_0 = arith.constant 0 : i32
    return %arg0, %c0_i32 : i32, i32
  }
  func.func @transform_1(%arg0: i32) -> (i32, i32) {
    %c0_i32 = arith.constant 0 : i32
    %c0_i32_0 = arith.constant 0 : i32
    %c0_i32_1 = arith.constant 0 : i32
    return %c0_i32, %c0_i32_0 : i32, i32
  }
  func.func @transform_2(%arg0: i32) -> (i32, i32) {
    %c0_i32 = arith.constant 0 : i32
    %c0_i32_0 = arith.constant 0 : i32
    %c0_i32_1 = arith.constant 0 : i32
    return %c0_i32, %c0_i32_0 : i32, i32
  }
  func.func @transform_3(%arg0: i32) -> (i32, i32) {
    %c0_i32 = arith.constant 0 : i32
    %c0_i32_0 = arith.constant 0 : i32
    %c0_i32_1 = arith.constant 0 : i32
    return %c0_i32, %c0_i32_0 : i32, i32
  }
  func.func @transform_4(%arg0: i32) -> (i32, i32) {
    %c0_i32 = arith.constant 0 : i32
    %c0_i32_0 = arith.constant 0 : i32
    %c0_i32_1 = arith.constant 0 : i32
    return %c0_i32, %c0_i32_0 : i32, i32
  }
  func.func @transform_5(%arg0: i32) -> (i32, i32) {
    %c0_i32 = arith.constant 0 : i32
    %c0_i32_0 = arith.constant 0 : i32
    return %arg0, %c0_i32 : i32, i32
  }
}

</mosaic_0001>

<llo_original>
// kernel: tpu_custom_call.1
$region0: #{tpu_custom_call.1}
  #allocation0 [shape = 'u32[]', space=smem, size = 0x4, offset = 0x4, fixed_abs, tag = 'smem constant byte address 0x4 - core index']
  #allocation1 [shape = 'u32[144,128]{1,0:T(1,128)}', space=vmem, size = 0x12000, scoped, tag = 'internal scratch']
  %s0 = inlined_call_operand.vmem [shape: f32[8,32], index: 0, kind: input, shape index: {}]
  %s1 = inlined_call_operand.vmem [shape: f32[32,128], index: 1, kind: input, shape index: {}]
  %s2 = inlined_call_operand.vmem [shape: f32[128,64], index: 2, kind: input, shape index: {}]
  %s3 = inlined_call_operand.vmem [shape: f32[64,8], index: 3, kind: input, shape index: {}]
  %s4 = inlined_call_operand.vmem [shape: f32[3,128], index: 4, kind: input, shape index: {}]
  %s5 = inlined_call_operand.hbm [shape: f32[8,8], index: 5, kind: output, shape index: {}]
  %s6 = sld [smem:[#allocation0]]
  $region30: #{tpu_custom_call.1} parent=0
    _
  %s8 = ssub.s32 1, %s6
  %s9 = scalar_select 0, %s8, %s6
  $region1: #{tpu_custom_call.1} parent=0
    #allocation2 [shape = 'u8[4096]{0}', space=vmem, size = 0x1000, scoped, tag = 'output window, operand 0, single buffered']
    #allocation3 [shape = 's32[1]{0}', space=sflag, size = 0x4, scoped, tag = 'scoped memory for tpu_custom_call.1']
    %10 = vsyncpa [#allocation3], 0
    // Predicated region
    $region2: #{tpu_custom_call.1} parent=1 // pred_check
      _
    $region3: #{tpu_custom_call.1} parent=1 // pred_check_branch
      %12 = sbr.rel (0) target = $region5
    $region4: #{tpu_custom_call.1} parent=1 // pred_region
      _
    $region5: #{tpu_custom_call.1} parent=1 // pred_fallthru
      _
    // Predicated region
    $region6: #{tpu_custom_call.1} parent=1 // pred_check
      _
    $region7: #{tpu_custom_call.1} parent=1 // pred_check_branch
      %14 = sbr.rel (0) target = $region9
    $region8: #{tpu_custom_call.1} parent=1 // pred_region
      _
    $region9: #{tpu_custom_call.1} parent=1 // pred_fallthru
      _
    // Predicated region
    $region10: #{tpu_custom_call.1} parent=1 // pred_check
      _
    $region11: #{tpu_custom_call.1} parent=1 // pred_check_branch
      %16 = sbr.rel (0) target = $region13
    $region12: #{tpu_custom_call.1} parent=1 // pred_region
      _
    $region13: #{tpu_custom_call.1} parent=1 // pred_fallthru
      _
    // Predicated region
    $region14: #{tpu_custom_call.1} parent=1 // pred_check
      _
    $region15: #{tpu_custom_call.1} parent=1 // pred_check_branch
      %18 = sbr.rel (0) target = $region17
    $region16: #{tpu_custom_call.1} parent=1 // pred_region
      _
    $region17: #{tpu_custom_call.1} parent=1 // pred_fallthru
      _
    // Predicated region
    $region18: #{tpu_custom_call.1} parent=1 // pred_check
      _
    $region19: #{tpu_custom_call.1} parent=1 // pred_check_branch
      %20 = sbr.rel (0) target = $region21
    $region20: #{tpu_custom_call.1} parent=1 // pred_region
      _
    $region21: #{tpu_custom_call.1} parent=1 // pred_fallthru
      _
    %v21 = vld [vmem:[%s4] sm:$0x1]
    %v22 = vld [vmem:[%s4 + $0x1] sm:$0x1]
    %v23 = vld [vmem:[%s4 + $0x2] sm:$0x1]
    %v24 = vld [vmem:[%s0] sm:$0xff]
    %v25 = vld [vmem:[%s1] sm:$0xff]
    %v26 = vld [vmem:[%s1 + $0x8] sm:$0xff]
    %v27 = vld [vmem:[%s1 + $0x10] sm:$0xff]
    %v28 = vld [vmem:[%s1 + $0x18] sm:$0xff]
    %v29 = vlaneseq
    %v30 = vshrl.u32 %v29, 7
    %v31 = vsub.s32 0, %v30
    %v32 = vrot.slane %v21, %v31
    %vm33 = vcmask 261120
    %v35 = vsel %vm33, %v24, 0
    %37 = vmatprep.subr.mxu0 0.0
    %38 = vmatpush1.msra.mxu0 %v25
    %39 = vmatprep.subr.mxu0 0.0
    %40 = vmatpush1.msra.mxu0 %v26
    %41 = vmatprep.subr.mxu0 0.0
    %42 = vmatpush1.msra.mxu0 %v27
    %43 = vmatprep.subr.mxu0 0.0
    %44 = vmatpush1.msra.mxu0 %v28
    %45 = vmatprep.subr.mxu0 0.0
    %46 = vmatpush1.msra.mxu0 0.0
    %47 = vmatprep.subr.mxu0 0.0
    %48 = vmatpush1.msra.mxu0 0.0
    %49 = vmatprep.subr.mxu0 0.0
    %50 = vmatpush1.msra.mxu0 0.0
    %51 = vmatprep.subr.mxu0 0.0
    %52 = vmatpush1.msra.mxu0 0.0
    %53 = vmatprep.subr.mxu0 0.0
    %54 = vmatpush1.msra.mxu0 0.0
    %55 = vmatprep.subr.mxu0 0.0
    %56 = vmatpush1.msra.mxu0 0.0
    %57 = vmatprep.subr.mxu0 0.0
    %58 = vmatpush1.msra.mxu0 0.0
    %59 = vmatprep.subr.mxu0 0.0
    %60 = vmatpush1.msra.mxu0 0.0
    %61 = vmatprep.subr.mxu0 0.0
    %62 = vmatpush1.msra.mxu0 0.0
    %63 = vmatprep.subr.mxu0 0.0
    %64 = vmatpush1.msra.mxu0 0.0
    %65 = vmatprep.subr.mxu0 0.0
    %66 = vmatpush1.msra.mxu0 0.0
    %67 = vmatprep.subr.mxu0 0.0
    %68 = vmatpush1.msra.mxu0 0.0
    %69 = vmatprep.subr.mxu0 0.0
    %70 = vmatpush1.msra.mxu0 0.0
    %71 = vmatprep.subr.mxu0 0.0
    %72 = vmatpush1.msra.mxu0 0.0
    %73 = vmatprep.subr.mxu0 0.0
    %74 = vmatpush1.msra.mxu0 0.0
    %75 = vmatprep.subr.mxu0 0.0
    %76 = vmatpush1.msra.mxu0 0.0
    %77 = vmatprep.subr.mxu0 0.0
    %78 = vmatpush1.msra.mxu0 0.0
    %79 = vmatprep.subr.mxu0 0.0
    %80 = vmatpush1.msra.mxu0 0.0
    %81 = vmatprep.subr.mxu0 0.0
    %82 = vmatpush1.msra.mxu0 0.0
    %83 = vmatprep.subr.mxu0 0.0
    %84 = vmatpush1.msra.mxu0 0.0
    %85 = vmatprep.subr.mxu0 0.0
    %86 = vmatpush1.msra.mxu0 0.0
    %87 = vmatprep.subr.mxu0 0.0
    %88 = vmatpush1.msra.mxu0 0.0
    %89 = vmatprep.subr.mxu0 0.0
    %90 = vmatpush1.msra.mxu0 0.0
    %91 = vmatprep.subr.mxu0 0.0
    %92 = vmatpush1.msra.mxu0 0.0
    %93 = vmatprep.subr.mxu0 0.0
    %94 = vmatpush1.msra.mxu0 0.0
    %95 = vmatprep.subr.mxu0 0.0
    %96 = vmatpush1.msra.mxu0 0.0
    %97 = vmatprep.subr.mxu0 0.0
    %98 = vmatpush1.msra.mxu0 0.0
    %99 = vmatprep.subr.mxu0 0.0
    %100 = vmatpush1.msra.mxu0 0.0
    %101 = vmatprep.mubr.f32.mxu0 0.0
    %102 = vmatmul.mubr.f32.gmra.mrb[0].mxu0 %v35
    %v103 = vpop.f32.mrb[0].mxu0
    %v104 = vadd.f32 %v32, %v103
    %v105 = vpop.f32.mrb[0].mxu0
    %106 = vdwg.mxu0
    %v107 = vmax.f32 %v104, 0.0
    %v108 = vld [vmem:[%s2] sm:$0xff]
    %v109 = vld [vmem:[%s2 + $0x8] sm:$0xff]
    %v110 = vld [vmem:[%s2 + $0x10] sm:$0xff]
    %v111 = vld [vmem:[%s2 + $0x18] sm:$0xff]
    %v112 = vld [vmem:[%s2 + $0x20] sm:$0xff]
    %v113 = vld [vmem:[%s2 + $0x28] sm:$0xff]
    %v114 = vld [vmem:[%s2 + $0x30] sm:$0xff]
    %v115 = vld [vmem:[%s2 + $0x38] sm:$0xff]
    %v116 = vld [vmem:[%s2 + $0x40] sm:$0xff]
    %v117 = vld [vmem:[%s2 + $0x48] sm:$0xff]
    %v118 = vld [vmem:[%s2 + $0x50] sm:$0xff]
    %v119 = vld [vmem:[%s2 + $0x58] sm:$0xff]
    %v120 = vld [vmem:[%s2 + $0x60] sm:$0xff]
    %v121 = vld [vmem:[%s2 + $0x68] sm:$0xff]
    %v122 = vld [vmem:[%s2 + $0x70] sm:$0xff]
    %v123 = vld [vmem:[%s2 + $0x78] sm:$0xff]
    %v124 = vlaneseq
    %v125 = vshrl.u32 %v124, 7
    %v126 = vsub.s32 0, %v125
    %v127 = vrot.slane %v22, %v126
    %128 = vmatprep.subr.mxu0 0.0
    %129 = vmatpush1.msra.mxu0 %v108
    %130 = vmatprep.subr.mxu0 0.0
    %131 = vmatpush1.msra.mxu0 %v109
    %132 = vmatprep.subr.mxu0 0.0
    %133 = vmatpush1.msra.mxu0 %v110
    %134 = vmatprep.subr.mxu0 0.0
    %135 = vmatpush1.msra.mxu0 %v111
    %136 = vmatprep.subr.mxu0 0.0
    %137 = vmatpush1.msra.mxu0 %v112
    %138 = vmatprep.subr.mxu0 0.0
    %139 = vmatpush1.msra.mxu0 %v113
    %140 = vmatprep.subr.mxu0 0.0
    %141 = vmatpush1.msra.mxu0 %v114
    %142 = vmatprep.subr.mxu0 0.0
    %143 = vmatpush1.msra.mxu0 %v115
    %144 = vmatprep.subr.mxu0 0.0
    %145 = vmatpush1.msra.mxu0 %v116
    %146 = vmatprep.subr.mxu0 0.0
    %147 = vmatpush1.msra.mxu0 %v117
    %148 = vmatprep.subr.mxu0 0.0
    %149 = vmatpush1.msra.mxu0 %v118
    %150 = vmatprep.subr.mxu0 0.0
    %151 = vmatpush1.msra.mxu0 %v119
    %152 = vmatprep.subr.mxu0 0.0
    %153 = vmatpush1.msra.mxu0 %v120
    %154 = vmatprep.subr.mxu0 0.0
    %155 = vmatpush1.msra.mxu0 %v121
    %156 = vmatprep.subr.mxu0 0.0
    %157 = vmatpush1.msra.mxu0 %v122
    %158 = vmatprep.subr.mxu0 0.0
    %159 = vmatpush1.msra.mxu0 %v123
    %160 = vmatprep.subr.mxu0 0.0
    %161 = vmatpush1.msra.mxu0 0.0
    %162 = vmatprep.subr.mxu0 0.0
    %163 = vmatpush1.msra.mxu0 0.0
    %164 = vmatprep.subr.mxu0 0.0
    %165 = vmatpush1.msra.mxu0 0.0
    %166 = vmatprep.subr.mxu0 0.0
    %167 = vmatpush1.msra.mxu0 0.0
    %168 = vmatprep.subr.mxu0 0.0
    %169 = vmatpush1.msra.mxu0 0.0
    %170 = vmatprep.subr.mxu0 0.0
    %171 = vmatpush1.msra.mxu0 0.0
    %172 = vmatprep.subr.mxu0 0.0
    %173 = vmatpush1.msra.mxu0 0.0
    %174 = vmatprep.subr.mxu0 0.0
    %175 = vmatpush1.msra.mxu0 0.0
    %176 = vmatprep.subr.mxu0 0.0
    %177 = vmatpush1.msra.mxu0 0.0
    %178 = vmatprep.subr.mxu0 0.0
    %179 = vmatpush1.msra.mxu0 0.0
    %180 = vmatprep.subr.mxu0 0.0
    %181 = vmatpush1.msra.mxu0 0.0
    %182 = vmatprep.subr.mxu0 0.0
    %183 = vmatpush1.msra.mxu0 0.0
    %184 = vmatprep.subr.mxu0 0.0
    %185 = vmatpush1.msra.mxu0 0.0
    %186 = vmatprep.subr.mxu0 0.0
    %187 = vmatpush1.msra.mxu0 0.0
    %188 = vmatprep.subr.mxu0 0.0
    %189 = vmatpush1.msra.mxu0 0.0
    %190 = vmatprep.subr.mxu0 0.0
    %191 = vmatpush1.msra.mxu0 0.0
    %192 = vmatprep.mubr.f32.mxu0 0.0
    %193 = vmatmul.mubr.f32.gmra.mrb[0].mxu0 %v107
    %v194 = vpop.f32.mrb[0].mxu0
    %v195 = vadd.f32 %v127, %v194
    %v196 = vpop.f32.mrb[0].mxu0
    %197 = vdwg.mxu0
    %v198 = vmax.f32 %v195, 0.0
    %v199 = vld [vmem:[%s3] sm:$0xff]
    %v200 = vld [vmem:[%s3 + $0x8] sm:$0xff]
    %v201 = vld [vmem:[%s3 + $0x10] sm:$0xff]
    %v202 = vld [vmem:[%s3 + $0x18] sm:$0xff]
    %v203 = vld [vmem:[%s3 + $0x20] sm:$0xff]
    %v204 = vld [vmem:[%s3 + $0x28] sm:$0xff]
    %v205 = vld [vmem:[%s3 + $0x30] sm:$0xff]
    %v206 = vld [vmem:[%s3 + $0x38] sm:$0xff]
    %v207 = vlaneseq
    %v208 = vshrl.u32 %v207, 7
    %v209 = vsub.s32 0, %v208
    %v210 = vrot.slane %v23, %v209
    %vm211 = vcmask 523264
    %v213 = vsel %vm211, %v198, 0
    %215 = vmatprep.subr.mxu0 0.0
    %216 = vmatpush1.msra.mxu0 %v199
    %217 = vmatprep.subr.mxu0 0.0
    %218 = vmatpush1.msra.mxu0 %v200
    %219 = vmatprep.subr.mxu0 0.0
    %220 = vmatpush1.msra.mxu0 %v201
    %221 = vmatprep.subr.mxu0 0.0
    %222 = vmatpush1.msra.mxu0 %v202
    %223 = vmatprep.subr.mxu0 0.0
    %224 = vmatpush1.msra.mxu0 %v203
    %225 = vmatprep.subr.mxu0 0.0
    %226 = vmatpush1.msra.mxu0 %v204
    %227 = vmatprep.subr.mxu0 0.0
    %228 = vmatpush1.msra.mxu0 %v205
    %229 = vmatprep.subr.mxu0 0.0
    %230 = vmatpush1.msra.mxu0 %v206
    %231 = vmatprep.subr.mxu0 0.0
    %232 = vmatpush1.msra.mxu0 0.0
    %233 = vmatprep.subr.mxu0 0.0
    %234 = vmatpush1.msra.mxu0 0.0
    %235 = vmatprep.subr.mxu0 0.0
    %236 = vmatpush1.msra.mxu0 0.0
    %237 = vmatprep.subr.mxu0 0.0
    %238 = vmatpush1.msra.mxu0 0.0
    %239 = vmatprep.subr.mxu0 0.0
    %240 = vmatpush1.msra.mxu0 0.0
    %241 = vmatprep.subr.mxu0 0.0
    %242 = vmatpush1.msra.mxu0 0.0
    %243 = vmatprep.subr.mxu0 0.0
    %244 = vmatpush1.msra.mxu0 0.0
    %245 = vmatprep.subr.mxu0 0.0
    %246 = vmatpush1.msra.mxu0 0.0
    %247 = vmatprep.subr.mxu0 0.0
    %248 = vmatpush1.msra.mxu0 0.0
    %249 = vmatprep.subr.mxu0 0.0
    %250 = vmatpush1.msra.mxu0 0.0
    %251 = vmatprep.subr.mxu0 0.0
    %252 = vmatpush1.msra.mxu0 0.0
    %253 = vmatprep.subr.mxu0 0.0
    %254 = vmatpush1.msra.mxu0 0.0
    %255 = vmatprep.subr.mxu0 0.0
    %256 = vmatpush1.msra.mxu0 0.0
    %257 = vmatprep.subr.mxu0 0.0
    %258 = vmatpush1.msra.mxu0 0.0
    %259 = vmatprep.subr.mxu0 0.0
    %260 = vmatpush1.msra.mxu0 0.0
    %261 = vmatprep.subr.mxu0 0.0
    %262 = vmatpush1.msra.mxu0 0.0
    %263 = vmatprep.subr.mxu0 0.0
    %264 = vmatpush1.msra.mxu0 0.0
    %265 = vmatprep.subr.mxu0 0.0
    %266 = vmatpush1.msra.mxu0 0.0
    %267 = vmatprep.subr.mxu0 0.0
    %268 = vmatpush1.msra.mxu0 0.0
    %269 = vmatprep.subr.mxu0 0.0
    %270 = vmatpush1.msra.mxu0 0.0
    %271 = vmatprep.subr.mxu0 0.0
    %272 = vmatpush1.msra.mxu0 0.0
    %273 = vmatprep.subr.mxu0 0.0
    %274 = vmatpush1.msra.mxu0 0.0
    %275 = vmatprep.subr.mxu0 0.0
    %276 = vmatpush1.msra.mxu0 0.0
    %277 = vmatprep.subr.mxu0 0.0
    %278 = vmatpush1.msra.mxu0 0.0
    %279 = vmatprep.mubr.f32.mxu0 0.0
    %280 = vmatmul.mubr.f32.gmra.mrb[0].mxu0 %v213
    %v281 = vpop.f32.mrb[0].mxu0
    %v282 = vadd.f32 %v210, %v281
    %v283 = vpop.f32.mrb[0].mxu0
    %284 = vdwg.mxu0
    %vm285 = vcmask 64512
    %286 = vst.msk [vmem:[#allocation2] sm:$0xff] %vm285, %v282
    // Predicated region
    $region22: #{tpu_custom_call.1} parent=1 // pred_check
      _
    $region23: #{tpu_custom_call.1} parent=1 // pred_check_branch
      %288 = sbr.rel (0) target = $region25
    $region24: #{tpu_custom_call.1} parent=1 // pred_region
      %s290 = ssub.s32 128, 128
      %291 = vsyncadd [#allocation3], %s290
      %s293 = sshll.u32 [#allocation2], 4
      %s294 = int_to_ptr.vmem [resolvable:$true] %s293
      %296 = dma.vmem_to_hbm [thread:$0]  %s294, 128, %s5, [#allocation3]
    $region25: #{tpu_custom_call.1} parent=1 // pred_fallthru
      _
    // Predicated region
    $region26: #{tpu_custom_call.1} parent=1 // pred_check
      _
    $region27: #{tpu_custom_call.1} parent=1 // pred_check_branch
      %298 = sbr.rel (0) target = $region29
    $region28: #{tpu_custom_call.1} parent=1 // pred_region
      %299 = dma.done [#allocation3], 128
    $region29: #{tpu_custom_call.1} parent=1 // pred_fallthru
      _
    %300 = vsyncpa [#allocation3], 1

</llo_original>
